<compile_context>
chip_gen: v6e
topology: v6e:2x2x1
jax: 0.10.0
libtpu: 0.0.40
codegen_flags: <defaults>
</compile_context>

<pallas_src>
import functools

import numpy as np
import jax
import jax.numpy as jnp
from jax.experimental import pallas as pl
from jax.experimental.pallas import tpu as pltpu


def _mha_kernel(x_ref, wqkv_ref, wp_ref, mask_ref, bp_ref, o_ref, *, B, T, C, H, hs):
    """Single grid step = whole batch.

    x_ref    : (B*T, C)   VMEM, MXU dtype (bf16 by default)
    wqkv_ref : (C, 3*C)   VMEM, fused [Q | K | V] weights, head-major columns,
                          softmax scale pre-folded into the Q columns.
    wp_ref   : (C, C)     VMEM, projection weight pre-transposed (y = ctx @ wp.T).
    mask_ref : (1, T, T)  VMEM, additive causal mask (0 / -1e30), f32.
    bp_ref   : (1, C)     VMEM, projection bias, f32.
    o_ref    : (B*T, C)   VMEM output block.
    """
    dt = wqkv_ref.dtype            # MXU operand dtype (bf16 or f32)

    # ---- fused, lane-dense QKV projection: one MXU matmul, f32 accumulation ----
    qkv = jnp.dot(x_ref[...], wqkv_ref[...],
                  preferred_element_type=jnp.float32)            # (B*T, 3C) f32

    # ---- regroup lane-major head columns into a (B*H, T, hs) batch of tiles ----
    # Static 2-D slices + stack along a new leading axis only (no lane-splitting
    # reshapes / 4-D transposes); every matmul below is batched over all B*H
    # (batch, head) pairs instead of being issued per head.
    def gather(col0):
        tiles = [qkv[b * T:(b + 1) * T, col0 + h * hs: col0 + (h + 1) * hs]
                 for b in range(B) for h in range(H)]            # each (T, hs)
        return jnp.stack(tiles, axis=0).astype(dt)               # (B*H, T, hs)

    q = gather(0)          # scale already folded into the Q weight columns
    k = gather(C)
    v = gather(2 * C)

    # ---- scores for all (batch, head) pairs: one batched dot_general ----
    s = jnp.einsum('gqd,gkd->gqk', q, k,
                   preferred_element_type=jnp.float32)           # (B*H, T, T) f32
    s = s + mask_ref[...]                                        # additive causal mask

    # ---- numerically-stable softmax, strictly f32 (v5e has no bf16 VPU/EUP) ----
    m = jnp.max(s, axis=-1, keepdims=True)
    p = jnp.exp(s - m)
    denom = jnp.sum(p, axis=-1, keepdims=True)
    p = p * pl.reciprocal(denom, approx=True)                    # EUP slot

    # ---- context for all (batch, head) pairs: one batched dot_general ----
    ctx = jnp.einsum('gqk,gkd->gqd', p.astype(dt), v,
                     preferred_element_type=jnp.float32)         # (B*H, T, hs) f32

    # ---- back to head-major lanes, then one fused output projection ----
    rows = [jnp.concatenate([ctx[b * H + h] for h in range(H)], axis=1)   # (T, C)
            for b in range(B)]
    ctx_cols = jnp.concatenate(rows, axis=0).astype(dt)                    # (B*T, C)

    y = jnp.dot(ctx_cols, wp_ref[...], preferred_element_type=jnp.float32)
    o_ref[...] = (y + bp_ref[...]).astype(o_ref.dtype)


def multi_head_attention(x, wq, wk, wv, wp, bp, *, mxu_dtype=jnp.bfloat16):
    """x: (B, T, C); wq/wk/wv: (H, C, hs); wp: (C, C) torch layout; bp: (C,)."""
    B, T, C = x.shape
    H, _, hs = wq.shape
    out_dtype = x.dtype
    f32 = jnp.float32

    # ---- one-time weight repacking, done in XLA outside the kernel -----------
    scale = C ** -0.5                       # module scales by C**-0.5 (n_embd)
    # (H, C, hs) -> (C, H*hs), head-major columns; scale folded in f32, then cast.
    wq_all = jnp.transpose(wq.astype(f32), (1, 0, 2)).reshape(C, H * hs) * scale
    wk_all = jnp.transpose(wk.astype(f32), (1, 0, 2)).reshape(C, H * hs)
    wv_all = jnp.transpose(wv.astype(f32), (1, 0, 2)).reshape(C, H * hs)
    wqkv = jnp.concatenate([wq_all, wk_all, wv_all], axis=1).astype(mxu_dtype)  # (C, 3C)
    wpT = jnp.transpose(wp).astype(mxu_dtype)                                   # (C, C)
    bp2 = bp.astype(f32).reshape(1, C)
    x_flat = x.reshape(B * T, C).astype(mxu_dtype)                              # (B*T, C)
    causal = jnp.tril(jnp.ones((T, T), dtype=bool))
    mask_add = jnp.where(causal, 0.0, -1e30).astype(f32).reshape(1, T, T)

    kernel = functools.partial(_mha_kernel, B=B, T=T, C=C, H=H, hs=hs)

    out_flat = pl.pallas_call(
        kernel,
        out_shape=jax.ShapeDtypeStruct((B * T, C), out_dtype),
        grid_spec=pltpu.PrefetchScalarGridSpec(
            num_scalar_prefetch=0,
            grid=(1,),                                  # whole batch, one step
            in_specs=[
                pl.BlockSpec((B * T, C), lambda i: (0, 0)),      # activations
                pl.BlockSpec((C, 3 * C), lambda i: (0, 0)),      # fused QKV weight
                pl.BlockSpec((C, C), lambda i: (0, 0)),          # proj weight (W.T)
                pl.BlockSpec((1, T, T), lambda i: (0, 0, 0)),    # additive causal mask
                pl.BlockSpec((1, C), lambda i: (0, 0)),          # proj bias
            ],
            out_specs=pl.BlockSpec((B * T, C), lambda i: (0, 0)),
        ),
        compiler_params=pltpu.CompilerParams(
            dimension_semantics=("arbitrary",),
            # Tiny footprint here; for production tiles raise toward 128 MiB on
            # v5e/v6e and cap ~48 MiB on v7x (64 MiB physical VMEM).
            vmem_limit_bytes=32 * 1024 * 1024,
        ),
    )(x_flat, wqkv, wpT, mask_add, bp2)

    return out_flat.reshape(B, T, C)


def _reference(x, wq, wk, wv, wp, bp):
    """Pure-JAX f32 reference mirroring the PyTorch forward (eval mode)."""
    B, T, C = x.shape
    H = wq.shape[0]
    scale = C ** -0.5
    causal = jnp.tril(jnp.ones((T, T), dtype=bool))
    outs = []
    for h in range(H):
        q = x @ wq[h]
        k = x @ wk[h]
        v = x @ wv[h]
        wei = (q @ jnp.swapaxes(k, -1, -2)) * scale
        wei = jnp.where(causal, wei, -jnp.inf)
        wei = jax.nn.softmax(wei, axis=-1)
        outs.append(wei @ v)
    out = jnp.concatenate(outs, axis=-1)
    return out @ wp.T + bp


if __name__ == "__main__":
    # Shapes consistent with the module: B=2, T=block_size=8, n_embd=32,
    # num_heads=4, head_size=8.
    B, T, C = 2, 8, 32
    H = 4
    hs = C // H

    key = jax.random.PRNGKey(0)
    kx, kq, kk, kv, kp, kb = jax.random.split(key, 6)

    x = jax.random.normal(kx, (B, T, C), dtype=jnp.float32)
    wq = jax.random.normal(kq, (H, C, hs), dtype=jnp.float32) * 0.1
    wk = jax.random.normal(kk, (H, C, hs), dtype=jnp.float32) * 0.1
    wv = jax.random.normal(kv, (H, C, hs), dtype=jnp.float32) * 0.1
    wp = jax.random.normal(kp, (C, C), dtype=jnp.float32) * 0.1
    bp = jax.random.normal(kb, (C,), dtype=jnp.float32) * 0.1

    ref = jax.block_until_ready(_reference(x, wq, wk, wv, wp, bp))

    # Default path: bf16 MXU operands (f32 accumulation, f32 softmax).
    out_bf16 = jax.block_until_ready(multi_head_attention(x, wq, wk, wv, wp, bp))
    assert out_bf16.shape == (B, T, C)
    # Looser tolerance reflects bf16 matmul operands + approx (EUP) reciprocal.
    np.testing.assert_allclose(np.asarray(out_bf16), np.asarray(ref),
                               atol=2e-2, rtol=2e-2)

    # Full-f32 MXU path: only the approximate reciprocal differs from the reference.
    out_f32 = jax.block_until_ready(
        multi_head_attention(x, wq, wk, wv, wp, bp, mxu_dtype=jnp.float32))
    np.testing.assert_allclose(np.asarray(out_f32), np.asarray(ref),
                               atol=5e-3, rtol=5e-3)

    print("KERNEL_OK")
</pallas_src>

<mosaic_0001>
module attributes {stable_mosaic.version = 11 : i64} {
  func.func @_mha_kernel(%arg0: i32, %arg1: memref<16x32xbf16, #tpu.memory_space<vmem>>, %arg2: memref<32x96xbf16, #tpu.memory_space<vmem>>, %arg3: memref<32x32xbf16, #tpu.memory_space<vmem>>, %arg4: memref<1x8x8xf32, #tpu.memory_space<vmem>>, %arg5: memref<1x32xf32, #tpu.memory_space<vmem>>, %arg6: memref<16x32xf32, #tpu.memory_space<vmem>>) attributes {dimension_semantics = [#tpu.dimension_semantics<arbitrary>], iteration_bounds = array<i64: 1>, scalar_prefetch = 0 : i64, scratch_operands = 0 : i64, tpu.core_type = #tpu.core_type<tc>, window_params = [{pipeline_mode = #tpu.pipeline_mode<synchronous>, transform_indices = @transform_0, window_bounds = array<i64: 16, 32>}, {pipeline_mode = #tpu.pipeline_mode<synchronous>, transform_indices = @transform_1, window_bounds = array<i64: 32, 96>}, {pipeline_mode = #tpu.pipeline_mode<synchronous>, transform_indices = @transform_2, window_bounds = array<i64: 32, 32>}, {pipeline_mode = #tpu.pipeline_mode<synchronous>, transform_indices = @transform_3, window_bounds = array<i64: 1, 8, 8>}, {pipeline_mode = #tpu.pipeline_mode<synchronous>, transform_indices = @transform_4, window_bounds = array<i64: 1, 32>}, {pipeline_mode = #tpu.pipeline_mode<synchronous>, transform_indices = @transform_5, window_bounds = array<i64: 16, 32>}]} {
    %c0 = arith.constant 0 : index
    %c0_0 = arith.constant 0 : index
    %0 = vector.load %arg1[%c0, %c0_0] : memref<16x32xbf16, #tpu.memory_space<vmem>>, vector<16x32xbf16>
    %c0_1 = arith.constant 0 : index
    %c0_2 = arith.constant 0 : index
    %1 = vector.load %arg2[%c0_1, %c0_2] : memref<32x96xbf16, #tpu.memory_space<vmem>>, vector<32x96xbf16>
    %cst = arith.constant dense<0.000000e+00> : vector<16x96xf32>
    %2 = tpu.matmul %0, %1, %cst {dimension_numbers = #tpu.dot_dimension_numbers<[1], [0], [0], [1], [0, 0, 1, 1], [], []>} : vector<16x32xbf16>, vector<32x96xbf16>, vector<16x96xf32> -> vector<16x96xf32>
    %3 = vector.extract_strided_slice %2 {offsets = [0, 0], sizes = [8, 8], strides = [1, 1]} : vector<16x96xf32> to vector<8x8xf32>
    %4 = vector.extract_strided_slice %2 {offsets = [0, 8], sizes = [8, 8], strides = [1, 1]} : vector<16x96xf32> to vector<8x8xf32>
    %5 = vector.extract_strided_slice %2 {offsets = [0, 16], sizes = [8, 8], strides = [1, 1]} : vector<16x96xf32> to vector<8x8xf32>
    %6 = vector.extract_strided_slice %2 {offsets = [0, 24], sizes = [8, 8], strides = [1, 1]} : vector<16x96xf32> to vector<8x8xf32>
    %7 = vector.extract_strided_slice %2 {offsets = [8, 0], sizes = [8, 8], strides = [1, 1]} : vector<16x96xf32> to vector<8x8xf32>
    %8 = vector.extract_strided_slice %2 {offsets = [8, 8], sizes = [8, 8], strides = [1, 1]} : vector<16x96xf32> to vector<8x8xf32>
    %9 = vector.extract_strided_slice %2 {offsets = [8, 16], sizes = [8, 8], strides = [1, 1]} : vector<16x96xf32> to vector<8x8xf32>
    %10 = vector.extract_strided_slice %2 {offsets = [8, 24], sizes = [8, 8], strides = [1, 1]} : vector<16x96xf32> to vector<8x8xf32>
    %11 = vector.shape_cast %3 : vector<8x8xf32> to vector<1x8x8xf32>
    %12 = vector.shape_cast %4 : vector<8x8xf32> to vector<1x8x8xf32>
    %13 = vector.shape_cast %5 : vector<8x8xf32> to vector<1x8x8xf32>
    %14 = vector.shape_cast %6 : vector<8x8xf32> to vector<1x8x8xf32>
    %15 = vector.shape_cast %7 : vector<8x8xf32> to vector<1x8x8xf32>
    %16 = vector.shape_cast %8 : vector<8x8xf32> to vector<1x8x8xf32>
    %17 = vector.shape_cast %9 : vector<8x8xf32> to vector<1x8x8xf32>
    %18 = vector.shape_cast %10 : vector<8x8xf32> to vector<1x8x8xf32>
    %19 = tpu.concatenate %11, %12, %13, %14, %15, %16, %17, %18 in 0 : vector<1x8x8xf32>, vector<1x8x8xf32>, vector<1x8x8xf32>, vector<1x8x8xf32>, vector<1x8x8xf32>, vector<1x8x8xf32>, vector<1x8x8xf32>, vector<1x8x8xf32> -> vector<8x8x8xf32>
    %20 = arith.truncf %19 : vector<8x8x8xf32> to vector<8x8x8xbf16>
    %21 = vector.extract_strided_slice %2 {offsets = [0, 32], sizes = [8, 8], strides = [1, 1]} : vector<16x96xf32> to vector<8x8xf32>
    %22 = vector.extract_strided_slice %2 {offsets = [0, 40], sizes = [8, 8], strides = [1, 1]} : vector<16x96xf32> to vector<8x8xf32>
    %23 = vector.extract_strided_slice %2 {offsets = [0, 48], sizes = [8, 8], strides = [1, 1]} : vector<16x96xf32> to vector<8x8xf32>
    %24 = vector.extract_strided_slice %2 {offsets = [0, 56], sizes = [8, 8], strides = [1, 1]} : vector<16x96xf32> to vector<8x8xf32>
    %25 = vector.extract_strided_slice %2 {offsets = [8, 32], sizes = [8, 8], strides = [1, 1]} : vector<16x96xf32> to vector<8x8xf32>
    %26 = vector.extract_strided_slice %2 {offsets = [8, 40], sizes = [8, 8], strides = [1, 1]} : vector<16x96xf32> to vector<8x8xf32>
    %27 = vector.extract_strided_slice %2 {offsets = [8, 48], sizes = [8, 8], strides = [1, 1]} : vector<16x96xf32> to vector<8x8xf32>
    %28 = vector.extract_strided_slice %2 {offsets = [8, 56], sizes = [8, 8], strides = [1, 1]} : vector<16x96xf32> to vector<8x8xf32>
    %29 = vector.shape_cast %21 : vector<8x8xf32> to vector<1x8x8xf32>
    %30 = vector.shape_cast %22 : vector<8x8xf32> to vector<1x8x8xf32>
    %31 = vector.shape_cast %23 : vector<8x8xf32> to vector<1x8x8xf32>
    %32 = vector.shape_cast %24 : vector<8x8xf32> to vector<1x8x8xf32>
    %33 = vector.shape_cast %25 : vector<8x8xf32> to vector<1x8x8xf32>
    %34 = vector.shape_cast %26 : vector<8x8xf32> to vector<1x8x8xf32>
    %35 = vector.shape_cast %27 : vector<8x8xf32> to vector<1x8x8xf32>
    %36 = vector.shape_cast %28 : vector<8x8xf32> to vector<1x8x8xf32>
    %37 = tpu.concatenate %29, %30, %31, %32, %33, %34, %35, %36 in 0 : vector<1x8x8xf32>, vector<1x8x8xf32>, vector<1x8x8xf32>, vector<1x8x8xf32>, vector<1x8x8xf32>, vector<1x8x8xf32>, vector<1x8x8xf32>, vector<1x8x8xf32> -> vector<8x8x8xf32>
    %38 = arith.truncf %37 : vector<8x8x8xf32> to vector<8x8x8xbf16>
    %39 = vector.extract_strided_slice %2 {offsets = [0, 64], sizes = [8, 8], strides = [1, 1]} : vector<16x96xf32> to vector<8x8xf32>
    %40 = vector.extract_strided_slice %2 {offsets = [0, 72], sizes = [8, 8], strides = [1, 1]} : vector<16x96xf32> to vector<8x8xf32>
    %41 = vector.extract_strided_slice %2 {offsets = [0, 80], sizes = [8, 8], strides = [1, 1]} : vector<16x96xf32> to vector<8x8xf32>
    %42 = vector.extract_strided_slice %2 {offsets = [0, 88], sizes = [8, 8], strides = [1, 1]} : vector<16x96xf32> to vector<8x8xf32>
    %43 = vector.extract_strided_slice %2 {offsets = [8, 64], sizes = [8, 8], strides = [1, 1]} : vector<16x96xf32> to vector<8x8xf32>
    %44 = vector.extract_strided_slice %2 {offsets = [8, 72], sizes = [8, 8], strides = [1, 1]} : vector<16x96xf32> to vector<8x8xf32>
    %45 = vector.extract_strided_slice %2 {offsets = [8, 80], sizes = [8, 8], strides = [1, 1]} : vector<16x96xf32> to vector<8x8xf32>
    %46 = vector.extract_strided_slice %2 {offsets = [8, 88], sizes = [8, 8], strides = [1, 1]} : vector<16x96xf32> to vector<8x8xf32>
    %47 = vector.shape_cast %39 : vector<8x8xf32> to vector<1x8x8xf32>
    %48 = vector.shape_cast %40 : vector<8x8xf32> to vector<1x8x8xf32>
    %49 = vector.shape_cast %41 : vector<8x8xf32> to vector<1x8x8xf32>
    %50 = vector.shape_cast %42 : vector<8x8xf32> to vector<1x8x8xf32>
    %51 = vector.shape_cast %43 : vector<8x8xf32> to vector<1x8x8xf32>
    %52 = vector.shape_cast %44 : vector<8x8xf32> to vector<1x8x8xf32>
    %53 = vector.shape_cast %45 : vector<8x8xf32> to vector<1x8x8xf32>
    %54 = vector.shape_cast %46 : vector<8x8xf32> to vector<1x8x8xf32>
    %55 = tpu.concatenate %47, %48, %49, %50, %51, %52, %53, %54 in 0 : vector<1x8x8xf32>, vector<1x8x8xf32>, vector<1x8x8xf32>, vector<1x8x8xf32>, vector<1x8x8xf32>, vector<1x8x8xf32>, vector<1x8x8xf32>, vector<1x8x8xf32> -> vector<8x8x8xf32>
    %56 = arith.truncf %55 : vector<8x8x8xf32> to vector<8x8x8xbf16>
    "tpu.trace_start"() <{level = 10 : i32, message = "gqd,gkd->gqk"}> : () -> ()
    %cst_3 = arith.constant dense<0.000000e+00> : vector<8x8x8xf32>
    %57 = tpu.matmul %20, %38, %cst_3 {dimension_numbers = #tpu.dot_dimension_numbers<[2], [2], [1], [1], [0, 0, 0, 1, 1, 1], [0], [0]>} : vector<8x8x8xbf16>, vector<8x8x8xbf16>, vector<8x8x8xf32> -> vector<8x8x8xf32>
    "tpu.trace_stop"() : () -> ()
    %c0_4 = arith.constant 0 : index
    %c0_5 = arith.constant 0 : index
    %c0_6 = arith.constant 0 : index
    %58 = vector.load %arg4[%c0_4, %c0_5, %c0_6] : memref<1x8x8xf32, #tpu.memory_space<vmem>>, vector<1x8x8xf32>
    %59 = vector.broadcast %58 : vector<1x8x8xf32> to vector<8x8x8xf32>
    %60 = arith.addf %57, %59 : vector<8x8x8xf32>
    %cst_7 = arith.constant dense<0xFF800000> : vector<8x8xf32>
    %61 = vector.multi_reduction <maximumf>, %60, %cst_7 [2] : vector<8x8x8xf32> to vector<8x8xf32>
    %62 = vector.shape_cast %61 : vector<8x8xf32> to vector<8x8x1xf32>
    %63 = vector.broadcast %62 : vector<8x8x1xf32> to vector<8x8x8xf32>
    %64 = arith.subf %60, %63 : vector<8x8x8xf32>
    %65 = math.exp %64 : vector<8x8x8xf32>
    %cst_8 = arith.constant dense<0.000000e+00> : vector<8x8xf32>
    %66 = vector.multi_reduction <add>, %65, %cst_8 [2] : vector<8x8x8xf32> to vector<8x8xf32>
    %67 = vector.shape_cast %66 : vector<8x8xf32> to vector<8x8x1xf32>
    %68 = tpu.reciprocal %67 {approx = true} : vector<8x8x1xf32> -> vector<8x8x1xf32>
    %69 = vector.broadcast %68 : vector<8x8x1xf32> to vector<8x8x8xf32>
    %70 = arith.mulf %65, %69 : vector<8x8x8xf32>
    %71 = arith.truncf %70 : vector<8x8x8xf32> to vector<8x8x8xbf16>
    "tpu.trace_start"() <{level = 10 : i32, message = "gqk,gkd->gqd"}> : () -> ()
    %cst_9 = arith.constant dense<0.000000e+00> : vector<8x8x8xf32>
    %72 = tpu.matmul %71, %56, %cst_9 {dimension_numbers = #tpu.dot_dimension_numbers<[2], [1], [1], [2], [0, 0, 0, 1, 1, 2], [0], [0]>} : vector<8x8x8xbf16>, vector<8x8x8xbf16>, vector<8x8x8xf32> -> vector<8x8x8xf32>
    "tpu.trace_stop"() : () -> ()
    %73 = vector.extract_strided_slice %72 {offsets = [0, 0, 0], sizes = [1, 8, 8], strides = [1, 1, 1]} : vector<8x8x8xf32> to vector<1x8x8xf32>
    %74 = vector.shape_cast %73 : vector<1x8x8xf32> to vector<8x8xf32>
    %75 = vector.extract_strided_slice %72 {offsets = [1, 0, 0], sizes = [1, 8, 8], strides = [1, 1, 1]} : vector<8x8x8xf32> to vector<1x8x8xf32>
    %76 = vector.shape_cast %75 : vector<1x8x8xf32> to vector<8x8xf32>
    %77 = vector.extract_strided_slice %72 {offsets = [2, 0, 0], sizes = [1, 8, 8], strides = [1, 1, 1]} : vector<8x8x8xf32> to vector<1x8x8xf32>
    %78 = vector.shape_cast %77 : vector<1x8x8xf32> to vector<8x8xf32>
    %79 = vector.extract_strided_slice %72 {offsets = [3, 0, 0], sizes = [1, 8, 8], strides = [1, 1, 1]} : vector<8x8x8xf32> to vector<1x8x8xf32>
    %80 = vector.shape_cast %79 : vector<1x8x8xf32> to vector<8x8xf32>
    %81 = tpu.concatenate %74, %76, %78, %80 in 1 : vector<8x8xf32>, vector<8x8xf32>, vector<8x8xf32>, vector<8x8xf32> -> vector<8x32xf32>
    %82 = vector.extract_strided_slice %72 {offsets = [4, 0, 0], sizes = [1, 8, 8], strides = [1, 1, 1]} : vector<8x8x8xf32> to vector<1x8x8xf32>
    %83 = vector.shape_cast %82 : vector<1x8x8xf32> to vector<8x8xf32>
    %84 = vector.extract_strided_slice %72 {offsets = [5, 0, 0], sizes = [1, 8, 8], strides = [1, 1, 1]} : vector<8x8x8xf32> to vector<1x8x8xf32>
    %85 = vector.shape_cast %84 : vector<1x8x8xf32> to vector<8x8xf32>
    %86 = vector.extract_strided_slice %72 {offsets = [6, 0, 0], sizes = [1, 8, 8], strides = [1, 1, 1]} : vector<8x8x8xf32> to vector<1x8x8xf32>
    %87 = vector.shape_cast %86 : vector<1x8x8xf32> to vector<8x8xf32>
    %88 = vector.extract_strided_slice %72 {offsets = [7, 0, 0], sizes = [1, 8, 8], strides = [1, 1, 1]} : vector<8x8x8xf32> to vector<1x8x8xf32>
    %89 = vector.shape_cast %88 : vector<1x8x8xf32> to vector<8x8xf32>
    %90 = tpu.concatenate %83, %85, %87, %89 in 1 : vector<8x8xf32>, vector<8x8xf32>, vector<8x8xf32>, vector<8x8xf32> -> vector<8x32xf32>
    %91 = tpu.concatenate %81, %90 in 0 : vector<8x32xf32>, vector<8x32xf32> -> vector<16x32xf32>
    %92 = arith.truncf %91 : vector<16x32xf32> to vector<16x32xbf16>
    %c0_10 = arith.constant 0 : index
    %c0_11 = arith.constant 0 : index
    %93 = vector.load %arg3[%c0_10, %c0_11] : memref<32x32xbf16, #tpu.memory_space<vmem>>, vector<32x32xbf16>
    %cst_12 = arith.constant dense<0.000000e+00> : vector<16x32xf32>
    %94 = tpu.matmul %92, %93, %cst_12 {dimension_numbers = #tpu.dot_dimension_numbers<[1], [0], [0], [1], [0, 0, 1, 1], [], []>} : vector<16x32xbf16>, vector<32x32xbf16>, vector<16x32xf32> -> vector<16x32xf32>
    %c0_13 = arith.constant 0 : index
    %c0_14 = arith.constant 0 : index
    %95 = vector.load %arg5[%c0_13, %c0_14] : memref<1x32xf32, #tpu.memory_space<vmem>>, vector<1x32xf32>
    %96 = vector.broadcast %95 : vector<1x32xf32> to vector<16x32xf32>
    %97 = arith.addf %94, %96 : vector<16x32xf32>
    %c0_15 = arith.constant 0 : index
    %c0_16 = arith.constant 0 : index
    %98 = vector.load %arg6[%c0_15, %c0_16] : memref<16x32xf32, #tpu.memory_space<vmem>>, vector<16x32xf32>
    tpu.vector_store %arg6[%c0_15, %c0_16], %97 {strides = array<i32>} : memref<16x32xf32, #tpu.memory_space<vmem>>, vector<16x32xf32>,
    return
  }
  func.func @transform_0(%arg0: i32) -> (i32, i32) {
    %c0_i32 = arith.constant 0 : i32
    %c0_i32_0 = arith.constant 0 : i32
    %c0_i32_1 = arith.constant 0 : i32
    return %c0_i32, %c0_i32_0 : i32, i32
  }
  func.func @transform_1(%arg0: i32) -> (i32, i32) {
    %c0_i32 = arith.constant 0 : i32
    %c0_i32_0 = arith.constant 0 : i32
    %c0_i32_1 = arith.constant 0 : i32
    return %c0_i32, %c0_i32_0 : i32, i32
  }
  func.func @transform_2(%arg0: i32) -> (i32, i32) {
    %c0_i32 = arith.constant 0 : i32
    %c0_i32_0 = arith.constant 0 : i32
    %c0_i32_1 = arith.constant 0 : i32
    return %c0_i32, %c0_i32_0 : i32, i32
  }
  func.func @transform_3(%arg0: i32) -> (i32, i32, i32) {
    %c0_i32 = arith.constant 0 : i32
    %c0_i32_0 = arith.constant 0 : i32
    %c0_i32_1 = arith.constant 0 : i32
    %c0_i32_2 = arith.constant 0 : i32
    return %c0_i32, %c0_i32_0, %c0_i32_1 : i32, i32, i32
  }
  func.func @transform_4(%arg0: i32) -> (i32, i32) {
    %c0_i32 = arith.constant 0 : i32
    %c0_i32_0 = arith.constant 0 : i32
    %c0_i32_1 = arith.constant 0 : i32
    return %c0_i32, %c0_i32_0 : i32, i32
  }
  func.func @transform_5(%arg0: i32) -> (i32, i32) {
    %c0_i32 = arith.constant 0 : i32
    %c0_i32_0 = arith.constant 0 : i32
    %c0_i32_1 = arith.constant 0 : i32
    return %c0_i32, %c0_i32_0 : i32, i32
  }
}

</mosaic_0001>

<llo_original>
// kernel: tpu_custom_call.1
$region0: #{tpu_custom_call.1}
  #allocation0 [shape = 'u32[]', space=smem, size = 0x4, offset = 0x4, fixed_abs, tag = 'smem constant byte address 0x4 - core index']
  #allocation1 [shape = 'u32[144,128]{1,0:T(1,128)}', space=vmem, size = 0x12000, scoped, tag = 'internal scratch']
  %s0 = inlined_call_operand.hbm [shape: bf16[16,32], index: 0, kind: input, shape index: {}]
  %s1 = inlined_call_operand.hbm [shape: bf16[32,96], index: 1, kind: input, shape index: {}]
  %s2 = inlined_call_operand.hbm [shape: bf16[32,32], index: 2, kind: input, shape index: {}]
  %s3 = inlined_call_operand.hbm [shape: f32[1,8,8], index: 3, kind: input, shape index: {}]
  %s4 = inlined_call_operand.vmem [shape: f32[1,32], index: 4, kind: input, shape index: {}]
  %s5 = inlined_call_operand.hbm [shape: f32[16,32], index: 5, kind: output, shape index: {}]
  %s6 = sld [smem:[#allocation0]]
  $region46: #{tpu_custom_call.1} parent=0
    _
  %s8 = ssub.s32 1, %s6
  %s9 = scalar_select 0, %s8, %s6
  $region1: #{tpu_custom_call.1} parent=0
    #allocation2 [shape = 'u8[4096]{0}', space=vmem, size = 0x1000, scoped, tag = 'input window, operand 0, single buffered']
    #allocation3 [shape = 's32[1]{0}', space=sflag, size = 0x4, scoped, tag = 'scoped memory for tpu_custom_call.1']
    #allocation4 [shape = 's32[1]{0}', space=sflag, size = 0x4, scoped, tag = 'scoped memory for tpu_custom_call.1']
    #allocation5 [shape = 'u8[8192]{0}', space=vmem, size = 0x2000, scoped, tag = 'input window, operand 1, single buffered']
    #allocation6 [shape = 's32[1]{0}', space=sflag, size = 0x4, scoped, tag = 'scoped memory for tpu_custom_call.1']
    #allocation7 [shape = 'u8[8192]{0}', space=vmem, size = 0x2000, scoped, tag = 'input window, operand 2, single buffered']
    #allocation8 [shape = 'u8[4096]{0}', space=vmem, size = 0x1000, scoped, tag = 'input window, operand 3, single buffered']
    #allocation9 [shape = 's32[1]{0}', space=sflag, size = 0x4, scoped, tag = 'scoped memory for tpu_custom_call.1']
    #allocation10 [shape = 'u8[8192]{0}', space=vmem, size = 0x2000, scoped, tag = 'output window, operand 0, single buffered']
    %10 = vsyncpa [#allocation3], 0
    %11 = vsyncpa [#allocation6], 0
    %12 = vsyncpa [#allocation9], 0
    %13 = vsyncpa [#allocation4], 0
    // Predicated region
    $region2: #{tpu_custom_call.1} parent=1 // pred_check
      _
    $region3: #{tpu_custom_call.1} parent=1 // pred_check_branch
      %15 = sbr.rel (0) target = $region5
    $region4: #{tpu_custom_call.1} parent=1 // pred_region
      %s17 = ssub.s32 128, 128
      %18 = vsyncadd [#allocation3], %s17
      %s19 = sshll.u32 [#allocation2], 4
      %s20 = int_to_ptr.vmem [resolvable:$true] %s19
      %25 = dma.hbm_to_vmem [thread:$0]  %s0, 128, %s20, [#allocation3], 64, 64, 4
    $region5: #{tpu_custom_call.1} parent=1 // pred_fallthru
      _
    // Predicated region
    $region6: #{tpu_custom_call.1} parent=1 // pred_check
      _
    $region7: #{tpu_custom_call.1} parent=1 // pred_check_branch
      %27 = sbr.rel (0) target = $region9
    $region8: #{tpu_custom_call.1} parent=1 // pred_region
      %s29 = ssub.s32 256, 256
      %30 = vsyncadd [#allocation6], %s29
      %s31 = sshll.u32 [#allocation5], 4
      %s32 = int_to_ptr.vmem [resolvable:$true] %s31
      %37 = dma.hbm_to_vmem [thread:$0]  %s1, 256, %s32, [#allocation6], 64, 64, 4
    $region9: #{tpu_custom_call.1} parent=1 // pred_fallthru
      _
    // Predicated region
    $region10: #{tpu_custom_call.1} parent=1 // pred_check
      _
    $region11: #{tpu_custom_call.1} parent=1 // pred_check_branch
      %39 = sbr.rel (0) target = $region13
    $region12: #{tpu_custom_call.1} parent=1 // pred_region
      %s41 = ssub.s32 256, 256
      %42 = vsyncadd [#allocation6], %s41
      %s43 = sshll.u32 [#allocation7], 4
      %s44 = int_to_ptr.vmem [resolvable:$true] %s43
      %49 = dma.hbm_to_vmem [thread:$0]  %s2, 256, %s44, [#allocation6], 64, 64, 4
    $region13: #{tpu_custom_call.1} parent=1 // pred_fallthru
      _
    // Predicated region
    $region14: #{tpu_custom_call.1} parent=1 // pred_check
      _
    $region15: #{tpu_custom_call.1} parent=1 // pred_check_branch
      %51 = sbr.rel (0) target = $region17
    $region16: #{tpu_custom_call.1} parent=1 // pred_region
      %s53 = ssub.s32 128, 128
      %54 = vsyncadd [#allocation9], %s53
      %s56 = sshll.u32 [#allocation8], 4
      %s57 = int_to_ptr.vmem [resolvable:$true] %s56
      %59 = dma.hbm_to_vmem [thread:$0]  %s3, 128, %s57, [#allocation9]
    $region17: #{tpu_custom_call.1} parent=1 // pred_fallthru
      _
    // Predicated region
    $region18: #{tpu_custom_call.1} parent=1 // pred_check
      _
    $region19: #{tpu_custom_call.1} parent=1 // pred_check_branch
      %61 = sbr.rel (0) target = $region21
    $region20: #{tpu_custom_call.1} parent=1 // pred_region
      _
    $region21: #{tpu_custom_call.1} parent=1 // pred_fallthru
      _
    // Predicated region
    $region22: #{tpu_custom_call.1} parent=1 // pred_check
      _
    $region23: #{tpu_custom_call.1} parent=1 // pred_check_branch
      %63 = sbr.rel (0) target = $region25
    $region24: #{tpu_custom_call.1} parent=1 // pred_region
      %64 = dma.done [#allocation3], 128
    $region25: #{tpu_custom_call.1} parent=1 // pred_fallthru
      _
    // Predicated region
    $region26: #{tpu_custom_call.1} parent=1 // pred_check
      _
    $region27: #{tpu_custom_call.1} parent=1 // pred_check_branch
      %66 = sbr.rel (0) target = $region29
    $region28: #{tpu_custom_call.1} parent=1 // pred_region
      %67 = dma.done [#allocation6], 256
    $region29: #{tpu_custom_call.1} parent=1 // pred_fallthru
      _
    // Predicated region
    $region30: #{tpu_custom_call.1} parent=1 // pred_check
      _
    $region31: #{tpu_custom_call.1} parent=1 // pred_check_branch
      %69 = sbr.rel (0) target = $region33
    $region32: #{tpu_custom_call.1} parent=1 // pred_region
      %70 = dma.done [#allocation6], 256
    $region33: #{tpu_custom_call.1} parent=1 // pred_fallthru
      _
    // Predicated region
    $region34: #{tpu_custom_call.1} parent=1 // pred_check
      _
    $region35: #{tpu_custom_call.1} parent=1 // pred_check_branch
      %72 = sbr.rel (0) target = $region37
    $region36: #{tpu_custom_call.1} parent=1 // pred_region
      %73 = dma.done [#allocation9], 128
    $region37: #{tpu_custom_call.1} parent=1 // pred_fallthru
      _
    %v75 = vld [vmem:[#allocation2] sm:$0xf]
    %v76 = vld [vmem:[#allocation2 + $0x4] sm:$0xf]
    %v77 = vld [vmem:[#allocation5] sm:$0xf]
    %v78 = vld [vmem:[#allocation5 + $0x4] sm:$0xf]
    %v79 = vld [vmem:[#allocation5 + $0x8] sm:$0xf]
    %v80 = vld [vmem:[#allocation5 + $0xc] sm:$0xf]
    %v83 = vunpack.c.l.b16 %v75
    %v84 = vunpack.c.l.b16 %v76
    %v85 = vpack.c.b16 %v84, %v83
    %v90 = vunpack.c.l.b16 %v77
    %v91 = vunpack.c.l.b16 %v78
    %v92 = vunpack.c.l.b16 %v79
    %v93 = vunpack.c.l.b16 %v80
    %v94 = vpack.c.b16 %v91, %v90
    %v95 = vpack.c.b16 %v93, %v92
    %vm98 = vcmask 261120
    %v100 = vsel %vm98, %v85, 0
    %102 = vmatprep.subr.bf16.mxu0 0
    %103 = vmatpush1.bf16.msra.mxu0 0
    %104 = vmatprep.subr.bf16.mxu0 0
    %105 = vmatpush1.bf16.msra.mxu0 0
    %106 = vmatprep.subr.bf16.mxu0 0
    %107 = vmatpush1.bf16.msra.mxu0 0
    %108 = vmatprep.subr.bf16.mxu0 0
    %109 = vmatpush1.bf16.msra.mxu0 0
    %110 = vmatprep.subr.bf16.mxu0 0
    %111 = vmatpush1.bf16.msra.mxu0 0
    %112 = vmatprep.subr.bf16.mxu0 0
    %113 = vmatpush1.bf16.msra.mxu0 0
    %114 = vmatprep.subr.bf16.mxu0 0
    %115 = vmatpush1.bf16.msra.mxu0 %v95
    %116 = vmatprep.subr.bf16.mxu0 0
    %117 = vmatpush1.bf16.msra.mxu0 %v94
    %118 = vmatprep.subr.bf16.mxu0 0
    %119 = vmatpush2.bf16.msra.mxu0 0
    %120 = vmatprep.subr.bf16.mxu0 0
    %121 = vmatpush2.bf16.msra.mxu0 0
    %122 = vmatprep.subr.bf16.mxu0 0
    %123 = vmatpush2.bf16.msra.mxu0 0
    %124 = vmatprep.subr.bf16.mxu0 0
    %125 = vmatpush2.bf16.msra.mxu0 0
    %126 = vmatprep.subr.bf16.mxu0 0
    %127 = vmatpush2.bf16.msra.mxu0 0
    %128 = vmatprep.subr.bf16.mxu0 0
    %129 = vmatpush2.bf16.msra.mxu0 0
    %130 = vmatprep.subr.bf16.mxu0 0
    %131 = vmatpush2.bf16.msra.mxu0 0
    %132 = vmatprep.subr.bf16.mxu0 0
    %133 = vmatpush2.bf16.msra.mxu0 0
    %134 = vmatprep.mubr.bf16.mxu0 0
    %135 = vmatmul.mubr.bf16.gmra.mxu0 %v100
    %v136 = vpop.f32.mrf.mxu0
    %v137 = vadd.f32 0.0, %v136
    %v138 = vpop.f32.mrf.mxu0
    %v139 = vpop.f32.mrf.mxu0
    %v140 = vadd.f32 0.0, %v139
    %v141 = vpop.f32.mrf.mxu0
    %142 = vdwg.mxu0
    %144 = vrot.lane.b32.xlu0 %v137, 120
    %v145 = vpop.permute.xlu0 %144
    %147 = vrot.lane.b32.xlu0 %v137, 112
    %v148 = vpop.permute.xlu0 %147
    %150 = vrot.lane.b32.xlu0 %v137, 104
    %v151 = vpop.permute.xlu0 %150
    %154 = vrot.lane.b32.xlu0 %v140, 120
    %v155 = vpop.permute.xlu0 %154
    %157 = vrot.lane.b32.xlu0 %v140, 112
    %v158 = vpop.permute.xlu0 %157
    %160 = vrot.lane.b32.xlu0 %v140, 104
    %v161 = vpop.permute.xlu0 %160
    %v163 = vpack.c.bf16 %v137, %v137
    %v164 = vpack.c.bf16 %v145, %v145
    %v165 = vpack.c.bf16 %v148, %v148
    %v166 = vpack.c.bf16 %v151, %v151
    %v167 = vpack.c.bf16 %v140, %v140
    %v168 = vpack.c.bf16 %v155, %v155
    %v169 = vpack.c.bf16 %v158, %v158
    %v170 = vpack.c.bf16 %v161, %v161
    %v171 = vld [vmem:[#allocation8] sm:$0xff]
    %173 = vrot.lane.b32.xlu0 %v163, 96
    %v174 = vpop.permute.xlu0 %173
    %vm175 = vcmask 64512
    %v177 = vsel %vm175, %v163, 0
    %v180 = vsel %vm175, %v174, 0
    %182 = vmatprep.subr.bf16.mxu0 0
    %183 = vmatpush1.bf16.xpose.msra.mxu0 0
    %184 = vmatprep.subr.bf16.mxu0 0
    %185 = vmatpush1.bf16.xpose.msra.mxu0 0
    %186 = vmatprep.subr.bf16.mxu0 0
    %187 = vmatpush1.bf16.xpose.msra.mxu0 0
    %188 = vmatprep.subr.bf16.mxu0 0
    %189 = vmatpush1.bf16.xpose.msra.mxu0 0
    %190 = vmatprep.subr.bf16.mxu0 0
    %191 = vmatpush1.bf16.xpose.msra.mxu0 0
    %192 = vmatprep.subr.bf16.mxu0 0
    %193 = vmatpush1.bf16.xpose.msra.mxu0 0
    %194 = vmatprep.subr.bf16.mxu0 0
    %195 = vmatpush1.bf16.xpose.msra.mxu0 0
    %196 = vmatprep.subr.bf16.mxu0 0
    %197 = vmatpush1.bf16.xpose.msra.mxu0 %v180
    %198 = vmatprep.subr.bf16.mxu0 0
    %199 = vmatpush2.bf16.xpose.msra.mxu0 0
    %200 = vmatprep.subr.bf16.mxu0 0
    %201 = vmatpush2.bf16.xpose.msra.mxu0 0
    %202 = vmatprep.subr.bf16.mxu0 0
    %203 = vmatpush2.bf16.xpose.msra.mxu0 0
    %204 = vmatprep.subr.bf16.mxu0 0
    %205 = vmatpush2.bf16.xpose.msra.mxu0 0
    %206 = vmatprep.subr.bf16.mxu0 0
    %207 = vmatpush2.bf16.xpose.msra.mxu0 0
    %208 = vmatprep.subr.bf16.mxu0 0
    %209 = vmatpush2.bf16.xpose.msra.mxu0 0
    %210 = vmatprep.subr.bf16.mxu0 0
    %211 = vmatpush2.bf16.xpose.msra.mxu0 0
    %212 = vmatprep.subr.bf16.mxu0 0
    %213 = vmatpush2.bf16.xpose.msra.mxu0 0
    %214 = vmatprep.mubr.bf16.mxu0 0
    %215 = vmatmul.mubr.bf16.gmra.mxu0 %v177
    %v216 = vpop.f32.mrf.mxu0
    %v217 = vadd.f32 %v171, %v216
    %v218 = vpop.f32.mrf.mxu0
    %v219 = vpop.f32.mrf.mxu0
    %v220 = vpop.f32.mrf.mxu0
    %221 = vdwg.mxu0
    %223 = vrot.lane.b32.xlu0 %v164, 96
    %v224 = vpop.permute.xlu0 %223
    %v226 = vsel %vm175, %v164, 0
    %v229 = vsel %vm175, %v224, 0
    %231 = vmatprep.subr.bf16.mxu0 0
    %232 = vmatpush1.bf16.xpose.msra.mxu0 0
    %233 = vmatprep.subr.bf16.mxu0 0
    %234 = vmatpush1.bf16.xpose.msra.mxu0 0
    %235 = vmatprep.subr.bf16.mxu0 0
    %236 = vmatpush1.bf16.xpose.msra.mxu0 0
    %237 = vmatprep.subr.bf16.mxu0 0
    %238 = vmatpush1.bf16.xpose.msra.mxu0 0
    %239 = vmatprep.subr.bf16.mxu0 0
    %240 = vmatpush1.bf16.xpose.msra.mxu0 0
    %241 = vmatprep.subr.bf16.mxu0 0
    %242 = vmatpush1.bf16.xpose.msra.mxu0 0
    %243 = vmatprep.subr.bf16.mxu0 0
    %244 = vmatpush1.bf16.xpose.msra.mxu0 0
    %245 = vmatprep.subr.bf16.mxu0 0
    %246 = vmatpush1.bf16.xpose.msra.mxu0 %v229
    %247 = vmatprep.subr.bf16.mxu0 0
    %248 = vmatpush2.bf16.xpose.msra.mxu0 0
    %249 = vmatprep.subr.bf16.mxu0 0
    %250 = vmatpush2.bf16.xpose.msra.mxu0 0
    %251 = vmatprep.subr.bf16.mxu0 0
    %252 = vmatpush2.bf16.xpose.msra.mxu0 0
    %253 = vmatprep.subr.bf16.mxu0 0
    %254 = vmatpush2.bf16.xpose.msra.mxu0 0
    %255 = vmatprep.subr.bf16.mxu0 0
    %256 = vmatpush2.bf16.xpose.msra.mxu0 0
    %257 = vmatprep.subr.bf16.mxu0 0
    %258 = vmatpush2.bf16.xpose.msra.mxu0 0
    %259 = vmatprep.subr.bf16.mxu0 0
    %260 = vmatpush2.bf16.xpose.msra.mxu0 0
    %261 = vmatprep.subr.bf16.mxu0 0
    %262 = vmatpush2.bf16.xpose.msra.mxu0 0
    %263 = vmatprep.mubr.bf16.mxu0 0
    %264 = vmatmul.mubr.bf16.gmra.mxu0 %v226
    %v265 = vpop.f32.mrf.mxu0
    %v266 = vadd.f32 %v171, %v265
    %v267 = vpop.f32.mrf.mxu0
    %v268 = vpop.f32.mrf.mxu0
    %v269 = vpop.f32.mrf.mxu0
    %270 = vdwg.mxu0
    %272 = vrot.lane.b32.xlu0 %v165, 96
    %v273 = vpop.permute.xlu0 %272
    %v275 = vsel %vm175, %v165, 0
    %v278 = vsel %vm175, %v273, 0
    %280 = vmatprep.subr.bf16.mxu0 0
    %281 = vmatpush1.bf16.xpose.msra.mxu0 0
    %282 = vmatprep.subr.bf16.mxu0 0
    %283 = vmatpush1.bf16.xpose.msra.mxu0 0
    %284 = vmatprep.subr.bf16.mxu0 0
    %285 = vmatpush1.bf16.xpose.msra.mxu0 0
    %286 = vmatprep.subr.bf16.mxu0 0
    %287 = vmatpush1.bf16.xpose.msra.mxu0 0
    %288 = vmatprep.subr.bf16.mxu0 0
    %289 = vmatpush1.bf16.xpose.msra.mxu0 0
    %290 = vmatprep.subr.bf16.mxu0 0
    %291 = vmatpush1.bf16.xpose.msra.mxu0 0
    %292 = vmatprep.subr.bf16.mxu0 0
    %293 = vmatpush1.bf16.xpose.msra.mxu0 0
    %294 = vmatprep.subr.bf16.mxu0 0
    %295 = vmatpush1.bf16.xpose.msra.mxu0 %v278
    %296 = vmatprep.subr.bf16.mxu0 0
    %297 = vmatpush2.bf16.xpose.msra.mxu0 0
    %298 = vmatprep.subr.bf16.mxu0 0
    %299 = vmatpush2.bf16.xpose.msra.mxu0 0
    %300 = vmatprep.subr.bf16.mxu0 0
    %301 = vmatpush2.bf16.xpose.msra.mxu0 0
    %302 = vmatprep.subr.bf16.mxu0 0
    %303 = vmatpush2.bf16.xpose.msra.mxu0 0
    %304 = vmatprep.subr.bf16.mxu0 0
    %305 = vmatpush2.bf16.xpose.msra.mxu0 0
    %306 = vmatprep.subr.bf16.mxu0 0
    %307 = vmatpush2.bf16.xpose.msra.mxu0 0
    %308 = vmatprep.subr.bf16.mxu0 0
    %309 = vmatpush2.bf16.xpose.msra.mxu0 0
    %310 = vmatprep.subr.bf16.mxu0 0
    %311 = vmatpush2.bf16.xpose.msra.mxu0 0
    %312 = vmatprep.mubr.bf16.mxu0 0
    %313 = vmatmul.mubr.bf16.gmra.mxu0 %v275
    %v314 = vpop.f32.mrf.mxu0
    %v315 = vadd.f32 %v171, %v314
    %v316 = vpop.f32.mrf.mxu0
    %v317 = vpop.f32.mrf.mxu0
    %v318 = vpop.f32.mrf.mxu0
    %319 = vdwg.mxu0
    %321 = vrot.lane.b32.xlu0 %v166, 96
    %v322 = vpop.permute.xlu0 %321
    %v324 = vsel %vm175, %v166, 0
    %v327 = vsel %vm175, %v322, 0
    %329 = vmatprep.subr.bf16.mxu0 0
    %330 = vmatpush1.bf16.xpose.msra.mxu0 0
    %331 = vmatprep.subr.bf16.mxu0 0
    %332 = vmatpush1.bf16.xpose.msra.mxu0 0
    %333 = vmatprep.subr.bf16.mxu0 0
    %334 = vmatpush1.bf16.xpose.msra.mxu0 0
    %335 = vmatprep.subr.bf16.mxu0 0
    %336 = vmatpush1.bf16.xpose.msra.mxu0 0
    %337 = vmatprep.subr.bf16.mxu0 0
    %338 = vmatpush1.bf16.xpose.msra.mxu0 0
    %339 = vmatprep.subr.bf16.mxu0 0
    %340 = vmatpush1.bf16.xpose.msra.mxu0 0
    %341 = vmatprep.subr.bf16.mxu0 0
    %342 = vmatpush1.bf16.xpose.msra.mxu0 0
    %343 = vmatprep.subr.bf16.mxu0 0
    %344 = vmatpush1.bf16.xpose.msra.mxu0 %v327
    %345 = vmatprep.subr.bf16.mxu0 0
    %346 = vmatpush2.bf16.xpose.msra.mxu0 0
    %347 = vmatprep.subr.bf16.mxu0 0
    %348 = vmatpush2.bf16.xpose.msra.mxu0 0
    %349 = vmatprep.subr.bf16.mxu0 0
    %350 = vmatpush2.bf16.xpose.msra.mxu0 0
    %351 = vmatprep.subr.bf16.mxu0 0
    %352 = vmatpush2.bf16.xpose.msra.mxu0 0
    %353 = vmatprep.subr.bf16.mxu0 0
    %354 = vmatpush2.bf16.xpose.msra.mxu0 0
    %355 = vmatprep.subr.bf16.mxu0 0
    %356 = vmatpush2.bf16.xpose.msra.mxu0 0
    %357 = vmatprep.subr.bf16.mxu0 0
    %358 = vmatpush2.bf16.xpose.msra.mxu0 0
    %359 = vmatprep.subr.bf16.mxu0 0
    %360 = vmatpush2.bf16.xpose.msra.mxu0 0
    %361 = vmatprep.mubr.bf16.mxu0 0
    %362 = vmatmul.mubr.bf16.gmra.mxu0 %v324
    %v363 = vpop.f32.mrf.mxu0
    %v364 = vadd.f32 %v171, %v363
    %v365 = vpop.f32.mrf.mxu0
    %v366 = vpop.f32.mrf.mxu0
    %v367 = vpop.f32.mrf.mxu0
    %368 = vdwg.mxu0
    %370 = vrot.lane.b32.xlu0 %v167, 96
    %v371 = vpop.permute.xlu0 %370
    %v373 = vsel %vm175, %v167, 0
    %v376 = vsel %vm175, %v371, 0
    %378 = vmatprep.subr.bf16.mxu0 0
    %379 = vmatpush1.bf16.xpose.msra.mxu0 0
    %380 = vmatprep.subr.bf16.mxu0 0
    %381 = vmatpush1.bf16.xpose.msra.mxu0 0
    %382 = vmatprep.subr.bf16.mxu0 0
    %383 = vmatpush1.bf16.xpose.msra.mxu0 0
    %384 = vmatprep.subr.bf16.mxu0 0
    %385 = vmatpush1.bf16.xpose.msra.mxu0 0
    %386 = vmatprep.subr.bf16.mxu0 0
    %387 = vmatpush1.bf16.xpose.msra.mxu0 0
    %388 = vmatprep.subr.bf16.mxu0 0
    %389 = vmatpush1.bf16.xpose.msra.mxu0 0
    %390 = vmatprep.subr.bf16.mxu0 0
    %391 = vmatpush1.bf16.xpose.msra.mxu0 0
    %392 = vmatprep.subr.bf16.mxu0 0
    %393 = vmatpush1.bf16.xpose.msra.mxu0 %v376
    %394 = vmatprep.subr.bf16.mxu0 0
    %395 = vmatpush2.bf16.xpose.msra.mxu0 0
    %396 = vmatprep.subr.bf16.mxu0 0
    %397 = vmatpush2.bf16.xpose.msra.mxu0 0
    %398 = vmatprep.subr.bf16.mxu0 0
    %399 = vmatpush2.bf16.xpose.msra.mxu0 0
    %400 = vmatprep.subr.bf16.mxu0 0
    %401 = vmatpush2.bf16.xpose.msra.mxu0 0
    %402 = vmatprep.subr.bf16.mxu0 0
    %403 = vmatpush2.bf16.xpose.msra.mxu0 0
    %404 = vmatprep.subr.bf16.mxu0 0
    %405 = vmatpush2.bf16.xpose.msra.mxu0 0
    %406 = vmatprep.subr.bf16.mxu0 0
    %407 = vmatpush2.bf16.xpose.msra.mxu0 0
    %408 = vmatprep.subr.bf16.mxu0 0
    %409 = vmatpush2.bf16.xpose.msra.mxu0 0
    %410 = vmatprep.mubr.bf16.mxu0 0
    %411 = vmatmul.mubr.bf16.gmra.mxu0 %v373
    %v412 = vpop.f32.mrf.mxu0
    %v413 = vadd.f32 %v171, %v412
    %v414 = vpop.f32.mrf.mxu0
    %v415 = vpop.f32.mrf.mxu0
    %v416 = vpop.f32.mrf.mxu0
    %417 = vdwg.mxu0
    %419 = vrot.lane.b32.xlu0 %v168, 96
    %v420 = vpop.permute.xlu0 %419
    %v422 = vsel %vm175, %v168, 0
    %v425 = vsel %vm175, %v420, 0
    %427 = vmatprep.subr.bf16.mxu0 0
    %428 = vmatpush1.bf16.xpose.msra.mxu0 0
    %429 = vmatprep.subr.bf16.mxu0 0
    %430 = vmatpush1.bf16.xpose.msra.mxu0 0
    %431 = vmatprep.subr.bf16.mxu0 0
    %432 = vmatpush1.bf16.xpose.msra.mxu0 0
    %433 = vmatprep.subr.bf16.mxu0 0
    %434 = vmatpush1.bf16.xpose.msra.mxu0 0
    %435 = vmatprep.subr.bf16.mxu0 0
    %436 = vmatpush1.bf16.xpose.msra.mxu0 0
    %437 = vmatprep.subr.bf16.mxu0 0
    %438 = vmatpush1.bf16.xpose.msra.mxu0 0
    %439 = vmatprep.subr.bf16.mxu0 0
    %440 = vmatpush1.bf16.xpose.msra.mxu0 0
    %441 = vmatprep.subr.bf16.mxu0 0
    %442 = vmatpush1.bf16.xpose.msra.mxu0 %v425
    %443 = vmatprep.subr.bf16.mxu0 0
    %444 = vmatpush2.bf16.xpose.msra.mxu0 0
    %445 = vmatprep.subr.bf16.mxu0 0
    %446 = vmatpush2.bf16.xpose.msra.mxu0 0
    %447 = vmatprep.subr.bf16.mxu0 0
    %448 = vmatpush2.bf16.xpose.msra.mxu0 0
    %449 = vmatprep.subr.bf16.mxu0 0
    %450 = vmatpush2.bf16.xpose.msra.mxu0 0
    %451 = vmatprep.subr.bf16.mxu0 0
    %452 = vmatpush2.bf16.xpose.msra.mxu0 0
    %453 = vmatprep.subr.bf16.mxu0 0
    %454 = vmatpush2.bf16.xpose.msra.mxu0 0
    %455 = vmatprep.subr.bf16.mxu0 0
    %456 = vmatpush2.bf16.xpose.msra.mxu0 0
    %457 = vmatprep.subr.bf16.mxu0 0
    %458 = vmatpush2.bf16.xpose.msra.mxu0 0
    %459 = vmatprep.mubr.bf16.mxu0 0
    %460 = vmatmul.mubr.bf16.gmra.mxu0 %v422
    %v461 = vpop.f32.mrf.mxu0
    %v462 = vadd.f32 %v171, %v461
    %v463 = vpop.f32.mrf.mxu0
    %v464 = vpop.f32.mrf.mxu0
    %v465 = vpop.f32.mrf.mxu0
    %466 = vdwg.mxu0
    %468 = vrot.lane.b32.xlu0 %v169, 96
    %v469 = vpop.permute.xlu0 %468
    %v471 = vsel %vm175, %v169, 0
    %v474 = vsel %vm175, %v469, 0
    %476 = vmatprep.subr.bf16.mxu0 0
    %477 = vmatpush1.bf16.xpose.msra.mxu0 0
    %478 = vmatprep.subr.bf16.mxu0 0
    %479 = vmatpush1.bf16.xpose.msra.mxu0 0
    %480 = vmatprep.subr.bf16.mxu0 0
    %481 = vmatpush1.bf16.xpose.msra.mxu0 0
    %482 = vmatprep.subr.bf16.mxu0 0
    %483 = vmatpush1.bf16.xpose.msra.mxu0 0
    %484 = vmatprep.subr.bf16.mxu0 0
    %485 = vmatpush1.bf16.xpose.msra.mxu0 0
    %486 = vmatprep.subr.bf16.mxu0 0
    %487 = vmatpush1.bf16.xpose.msra.mxu0 0
    %488 = vmatprep.subr.bf16.mxu0 0
    %489 = vmatpush1.bf16.xpose.msra.mxu0 0
    %490 = vmatprep.subr.bf16.mxu0 0
    %491 = vmatpush1.bf16.xpose.msra.mxu0 %v474
    %492 = vmatprep.subr.bf16.mxu0 0
    %493 = vmatpush2.bf16.xpose.msra.mxu0 0
    %494 = vmatprep.subr.bf16.mxu0 0
    %495 = vmatpush2.bf16.xpose.msra.mxu0 0
    %496 = vmatprep.subr.bf16.mxu0 0
    %497 = vmatpush2.bf16.xpose.msra.mxu0 0
    %498 = vmatprep.subr.bf16.mxu0 0
    %499 = vmatpush2.bf16.xpose.msra.mxu0 0
    %500 = vmatprep.subr.bf16.mxu0 0
    %501 = vmatpush2.bf16.xpose.msra.mxu0 0
    %502 = vmatprep.subr.bf16.mxu0 0
    %503 = vmatpush2.bf16.xpose.msra.mxu0 0
    %504 = vmatprep.subr.bf16.mxu0 0
    %505 = vmatpush2.bf16.xpose.msra.mxu0 0
    %506 = vmatprep.subr.bf16.mxu0 0
    %507 = vmatpush2.bf16.xpose.msra.mxu0 0
    %508 = vmatprep.mubr.bf16.mxu0 0
    %509 = vmatmul.mubr.bf16.gmra.mxu0 %v471
    %v510 = vpop.f32.mrf.mxu0
    %v511 = vadd.f32 %v171, %v510
    %v512 = vpop.f32.mrf.mxu0
    %v513 = vpop.f32.mrf.mxu0
    %v514 = vpop.f32.mrf.mxu0
    %515 = vdwg.mxu0
    %517 = vrot.lane.b32.xlu0 %v170, 96
    %v518 = vpop.permute.xlu0 %517
    %v520 = vsel %vm175, %v170, 0
    %v523 = vsel %vm175, %v518, 0
    %525 = vmatprep.subr.bf16.mxu0 0
    %526 = vmatpush1.bf16.xpose.msra.mxu0 0
    %527 = vmatprep.subr.bf16.mxu0 0
    %528 = vmatpush1.bf16.xpose.msra.mxu0 0
    %529 = vmatprep.subr.bf16.mxu0 0
    %530 = vmatpush1.bf16.xpose.msra.mxu0 0
    %531 = vmatprep.subr.bf16.mxu0 0
    %532 = vmatpush1.bf16.xpose.msra.mxu0 0
    %533 = vmatprep.subr.bf16.mxu0 0
    %534 = vmatpush1.bf16.xpose.msra.mxu0 0
    %535 = vmatprep.subr.bf16.mxu0 0
    %536 = vmatpush1.bf16.xpose.msra.mxu0 0
    %537 = vmatprep.subr.bf16.mxu0 0
    %538 = vmatpush1.bf16.xpose.msra.mxu0 0
    %539 = vmatprep.subr.bf16.mxu0 0
    %540 = vmatpush1.bf16.xpose.msra.mxu0 %v523
    %541 = vmatprep.subr.bf16.mxu0 0
    %542 = vmatpush2.bf16.xpose.msra.mxu0 0
    %543 = vmatprep.subr.bf16.mxu0 0
    %544 = vmatpush2.bf16.xpose.msra.mxu0 0
    %545 = vmatprep.subr.bf16.mxu0 0
    %546 = vmatpush2.bf16.xpose.msra.mxu0 0
    %547 = vmatprep.subr.bf16.mxu0 0
    %548 = vmatpush2.bf16.xpose.msra.mxu0 0
    %549 = vmatprep.subr.bf16.mxu0 0
    %550 = vmatpush2.bf16.xpose.msra.mxu0 0
    %551 = vmatprep.subr.bf16.mxu0 0
    %552 = vmatpush2.bf16.xpose.msra.mxu0 0
    %553 = vmatprep.subr.bf16.mxu0 0
    %554 = vmatpush2.bf16.xpose.msra.mxu0 0
    %555 = vmatprep.subr.bf16.mxu0 0
    %556 = vmatpush2.bf16.xpose.msra.mxu0 0
    %557 = vmatprep.mubr.bf16.mxu0 0
    %558 = vmatmul.mubr.bf16.gmra.mxu0 %v520
    %v559 = vpop.f32.mrf.mxu0
    %v560 = vadd.f32 %v171, %v559
    %v561 = vpop.f32.mrf.mxu0
    %v562 = vpop.f32.mrf.mxu0
    %v563 = vpop.f32.mrf.mxu0
    %564 = vdwg.mxu0
    %v565 = vsel %vm175, %v217, -inf
    %566 = vmax.xlane.f32.xlu0 %v565
    %v567 = vpop.xlane.xlu0 %566
    %v568 = vsel %vm175, %v266, -inf
    %569 = vmax.xlane.f32.xlu0 %v568
    %v570 = vpop.xlane.xlu0 %569
    %v571 = vsel %vm175, %v315, -inf
    %572 = vmax.xlane.f32.xlu0 %v571
    %v573 = vpop.xlane.xlu0 %572
    %v574 = vsel %vm175, %v364, -inf
    %575 = vmax.xlane.f32.xlu0 %v574
    %v576 = vpop.xlane.xlu0 %575
    %v577 = vsel %vm175, %v413, -inf
    %578 = vmax.xlane.f32.xlu0 %v577
    %v579 = vpop.xlane.xlu0 %578
    %v580 = vsel %vm175, %v462, -inf
    %581 = vmax.xlane.f32.xlu0 %v580
    %v582 = vpop.xlane.xlu0 %581
    %v583 = vsel %vm175, %v511, -inf
    %584 = vmax.xlane.f32.xlu0 %v583
    %v585 = vpop.xlane.xlu0 %584
    %v586 = vsel %vm175, %v560, -inf
    %587 = vmax.xlane.f32.xlu0 %v586
    %v588 = vpop.xlane.xlu0 %587
    %v589 = vsub.f32 %v217, %v567
    %v590 = vsub.f32 %v266, %v570
    %v591 = vsub.f32 %v315, %v573
    %v592 = vsub.f32 %v364, %v576
    %v593 = vsub.f32 %v413, %v579
    %v594 = vsub.f32 %v462, %v582
    %v595 = vsub.f32 %v511, %v585
    %v596 = vsub.f32 %v560, %v588
    %v597 = vmul.f32 %v589, 1.442695
    %v598 = vpow.pop %v597
    %v599 = vmul.f32 %v590, 1.442695
    %v600 = vpow.pop %v599
    %v601 = vmul.f32 %v591, 1.442695
    %v602 = vpow.pop %v601
    %v603 = vmul.f32 %v592, 1.442695
    %v604 = vpow.pop %v603
    %v605 = vmul.f32 %v593, 1.442695
    %v606 = vpow.pop %v605
    %v607 = vmul.f32 %v594, 1.442695
    %v608 = vpow.pop %v607
    %v609 = vmul.f32 %v595, 1.442695
    %v610 = vpow.pop %v609
    %v611 = vmul.f32 %v596, 1.442695
    %v612 = vpow.pop %v611
    %v613 = vsel %vm175, %v598, 0.0
    %614 = vadd.xlane.f32.xlu0 %v613
    %v615 = vpop.xlane.xlu0 %614
    %v616 = vsel %vm175, %v600, 0.0
    %617 = vadd.xlane.f32.xlu0 %v616
    %v618 = vpop.xlane.xlu0 %617
    %v619 = vsel %vm175, %v602, 0.0
    %620 = vadd.xlane.f32.xlu0 %v619
    %v621 = vpop.xlane.xlu0 %620
    %v622 = vsel %vm175, %v604, 0.0
    %623 = vadd.xlane.f32.xlu0 %v622
    %v624 = vpop.xlane.xlu0 %623
    %v625 = vsel %vm175, %v606, 0.0
    %626 = vadd.xlane.f32.xlu0 %v625
    %v627 = vpop.xlane.xlu0 %626
    %v628 = vsel %vm175, %v608, 0.0
    %629 = vadd.xlane.f32.xlu0 %v628
    %v630 = vpop.xlane.xlu0 %629
    %v631 = vsel %vm175, %v610, 0.0
    %632 = vadd.xlane.f32.xlu0 %v631
    %v633 = vpop.xlane.xlu0 %632
    %v634 = vsel %vm175, %v612, 0.0
    %635 = vadd.xlane.f32.xlu0 %v634
    %v636 = vpop.xlane.xlu0 %635
    %v637 = vrcp.pop %v615
    %v638 = vrcp.pop %v618
    %v639 = vrcp.pop %v621
    %v640 = vrcp.pop %v624
    %v641 = vrcp.pop %v627
    %v642 = vrcp.pop %v630
    %v643 = vrcp.pop %v633
    %v644 = vrcp.pop %v636
    %v645 = vmul.f32 %v598, %v637
    %v646 = vmul.f32 %v600, %v638
    %v647 = vmul.f32 %v602, %v639
    %v648 = vmul.f32 %v604, %v640
    %v649 = vmul.f32 %v606, %v641
    %v650 = vmul.f32 %v608, %v642
    %v651 = vmul.f32 %v610, %v643
    %v652 = vmul.f32 %v612, %v644
    %v653 = vpack.c.bf16 %v645, %v645
    %v654 = vpack.c.bf16 %v646, %v646
    %v655 = vpack.c.bf16 %v647, %v647
    %v656 = vpack.c.bf16 %v648, %v648
    %v657 = vpack.c.bf16 %v649, %v649
    %v658 = vpack.c.bf16 %v650, %v650
    %v659 = vpack.c.bf16 %v651, %v651
    %v660 = vpack.c.bf16 %v652, %v652
    %661 = vrot.lane.b32.xlu0 %v163, 64
    %v662 = vpop.permute.xlu0 %661
    %v664 = vsel %vm175, %v653, 0
    %vm666 = vcmask 1043456
    %v668 = vsel %vm666, %v662, 0
    %670 = vmatprep.subr.bf16.mxu0 0
    %671 = vmatpush1.bf16.msra.mxu0 0
    %672 = vmatprep.subr.bf16.mxu0 0
    %673 = vmatpush1.bf16.msra.mxu0 0
    %674 = vmatprep.subr.bf16.mxu0 0
    %675 = vmatpush1.bf16.msra.mxu0 0
    %676 = vmatprep.subr.bf16.mxu0 0
    %677 = vmatpush1.bf16.msra.mxu0 0
    %678 = vmatprep.subr.bf16.mxu0 0
    %679 = vmatpush1.bf16.msra.mxu0 0
    %680 = vmatprep.subr.bf16.mxu0 0
    %681 = vmatpush1.bf16.msra.mxu0 0
    %682 = vmatprep.subr.bf16.mxu0 0
    %683 = vmatpush1.bf16.msra.mxu0 0
    %684 = vmatprep.subr.bf16.mxu0 0
    %685 = vmatpush1.bf16.msra.mxu0 %v668
    %686 = vmatprep.subr.bf16.mxu0 0
    %687 = vmatpush2.bf16.msra.mxu0 0
    %688 = vmatprep.subr.bf16.mxu0 0
    %689 = vmatpush2.bf16.msra.mxu0 0
    %690 = vmatprep.subr.bf16.mxu0 0
    %691 = vmatpush2.bf16.msra.mxu0 0
    %692 = vmatprep.subr.bf16.mxu0 0
    %693 = vmatpush2.bf16.msra.mxu0 0
    %694 = vmatprep.subr.bf16.mxu0 0
    %695 = vmatpush2.bf16.msra.mxu0 0
    %696 = vmatprep.subr.bf16.mxu0 0
    %697 = vmatpush2.bf16.msra.mxu0 0
    %698 = vmatprep.subr.bf16.mxu0 0
    %699 = vmatpush2.bf16.msra.mxu0 0
    %700 = vmatprep.subr.bf16.mxu0 0
    %701 = vmatpush2.bf16.msra.mxu0 0
    %702 = vmatprep.mubr.bf16.mxu0 0
    %703 = vmatmul.mubr.bf16.gmra.mxu0 %v664
    %v704 = vpop.f32.mrf.mxu0
    %v705 = vadd.f32 0.0, %v704
    %v706 = vpop.f32.mrf.mxu0
    %v707 = vpop.f32.mrf.mxu0
    %v708 = vpop.f32.mrf.mxu0
    %709 = vdwg.mxu0
    %710 = vrot.lane.b32.xlu0 %v164, 64
    %v711 = vpop.permute.xlu0 %710
    %v713 = vsel %vm175, %v654, 0
    %v716 = vsel %vm666, %v711, 0
    %718 = vmatprep.subr.bf16.mxu0 0
    %719 = vmatpush1.bf16.msra.mxu0 0
    %720 = vmatprep.subr.bf16.mxu0 0
    %721 = vmatpush1.bf16.msra.mxu0 0
    %722 = vmatprep.subr.bf16.mxu0 0
    %723 = vmatpush1.bf16.msra.mxu0 0
    %724 = vmatprep.subr.bf16.mxu0 0
    %725 = vmatpush1.bf16.msra.mxu0 0
    %726 = vmatprep.subr.bf16.mxu0 0
    %727 = vmatpush1.bf16.msra.mxu0 0
    %728 = vmatprep.subr.bf16.mxu0 0
    %729 = vmatpush1.bf16.msra.mxu0 0
    %730 = vmatprep.subr.bf16.mxu0 0
    %731 = vmatpush1.bf16.msra.mxu0 0
    %732 = vmatprep.subr.bf16.mxu0 0
    %733 = vmatpush1.bf16.msra.mxu0 %v716
    %734 = vmatprep.subr.bf16.mxu0 0
    %735 = vmatpush2.bf16.msra.mxu0 0
    %736 = vmatprep.subr.bf16.mxu0 0
    %737 = vmatpush2.bf16.msra.mxu0 0
    %738 = vmatprep.subr.bf16.mxu0 0
    %739 = vmatpush2.bf16.msra.mxu0 0
    %740 = vmatprep.subr.bf16.mxu0 0
    %741 = vmatpush2.bf16.msra.mxu0 0
    %742 = vmatprep.subr.bf16.mxu0 0
    %743 = vmatpush2.bf16.msra.mxu0 0
    %744 = vmatprep.subr.bf16.mxu0 0
    %745 = vmatpush2.bf16.msra.mxu0 0
    %746 = vmatprep.subr.bf16.mxu0 0
    %747 = vmatpush2.bf16.msra.mxu0 0
    %748 = vmatprep.subr.bf16.mxu0 0
    %749 = vmatpush2.bf16.msra.mxu0 0
    %750 = vmatprep.mubr.bf16.mxu0 0
    %751 = vmatmul.mubr.bf16.gmra.mxu0 %v713
    %v752 = vpop.f32.mrf.mxu0
    %v753 = vadd.f32 0.0, %v752
    %v754 = vpop.f32.mrf.mxu0
    %v755 = vpop.f32.mrf.mxu0
    %v756 = vpop.f32.mrf.mxu0
    %757 = vdwg.mxu0
    %758 = vrot.lane.b32.xlu0 %v165, 64
    %v759 = vpop.permute.xlu0 %758
    %v761 = vsel %vm175, %v655, 0
    %v764 = vsel %vm666, %v759, 0
    %766 = vmatprep.subr.bf16.mxu0 0
    %767 = vmatpush1.bf16.msra.mxu0 0
    %768 = vmatprep.subr.bf16.mxu0 0
    %769 = vmatpush1.bf16.msra.mxu0 0
    %770 = vmatprep.subr.bf16.mxu0 0
    %771 = vmatpush1.bf16.msra.mxu0 0
    %772 = vmatprep.subr.bf16.mxu0 0
    %773 = vmatpush1.bf16.msra.mxu0 0
    %774 = vmatprep.subr.bf16.mxu0 0
    %775 = vmatpush1.bf16.msra.mxu0 0
    %776 = vmatprep.subr.bf16.mxu0 0
    %777 = vmatpush1.bf16.msra.mxu0 0
    %778 = vmatprep.subr.bf16.mxu0 0
    %779 = vmatpush1.bf16.msra.mxu0 0
    %780 = vmatprep.subr.bf16.mxu0 0
    %781 = vmatpush1.bf16.msra.mxu0 %v764
    %782 = vmatprep.subr.bf16.mxu0 0
    %783 = vmatpush2.bf16.msra.mxu0 0
    %784 = vmatprep.subr.bf16.mxu0 0
    %785 = vmatpush2.bf16.msra.mxu0 0
    %786 = vmatprep.subr.bf16.mxu0 0
    %787 = vmatpush2.bf16.msra.mxu0 0
    %788 = vmatprep.subr.bf16.mxu0 0
    %789 = vmatpush2.bf16.msra.mxu0 0
    %790 = vmatprep.subr.bf16.mxu0 0
    %791 = vmatpush2.bf16.msra.mxu0 0
    %792 = vmatprep.subr.bf16.mxu0 0
    %793 = vmatpush2.bf16.msra.mxu0 0
    %794 = vmatprep.subr.bf16.mxu0 0
    %795 = vmatpush2.bf16.msra.mxu0 0
    %796 = vmatprep.subr.bf16.mxu0 0
    %797 = vmatpush2.bf16.msra.mxu0 0
    %798 = vmatprep.mubr.bf16.mxu0 0
    %799 = vmatmul.mubr.bf16.gmra.mxu0 %v761
    %v800 = vpop.f32.mrf.mxu0
    %v801 = vadd.f32 0.0, %v800
    %v802 = vpop.f32.mrf.mxu0
    %v803 = vpop.f32.mrf.mxu0
    %v804 = vpop.f32.mrf.mxu0
    %805 = vdwg.mxu0
    %806 = vrot.lane.b32.xlu0 %v166, 64
    %v807 = vpop.permute.xlu0 %806
    %v809 = vsel %vm175, %v656, 0
    %v812 = vsel %vm666, %v807, 0
    %814 = vmatprep.subr.bf16.mxu0 0
    %815 = vmatpush1.bf16.msra.mxu0 0
    %816 = vmatprep.subr.bf16.mxu0 0
    %817 = vmatpush1.bf16.msra.mxu0 0
    %818 = vmatprep.subr.bf16.mxu0 0
    %819 = vmatpush1.bf16.msra.mxu0 0
    %820 = vmatprep.subr.bf16.mxu0 0
    %821 = vmatpush1.bf16.msra.mxu0 0
    %822 = vmatprep.subr.bf16.mxu0 0
    %823 = vmatpush1.bf16.msra.mxu0 0
    %824 = vmatprep.subr.bf16.mxu0 0
    %825 = vmatpush1.bf16.msra.mxu0 0
    %826 = vmatprep.subr.bf16.mxu0 0
    %827 = vmatpush1.bf16.msra.mxu0 0
    %828 = vmatprep.subr.bf16.mxu0 0
    %829 = vmatpush1.bf16.msra.mxu0 %v812
    %830 = vmatprep.subr.bf16.mxu0 0
    %831 = vmatpush2.bf16.msra.mxu0 0
    %832 = vmatprep.subr.bf16.mxu0 0
    %833 = vmatpush2.bf16.msra.mxu0 0
    %834 = vmatprep.subr.bf16.mxu0 0
    %835 = vmatpush2.bf16.msra.mxu0 0
    %836 = vmatprep.subr.bf16.mxu0 0
    %837 = vmatpush2.bf16.msra.mxu0 0
    %838 = vmatprep.subr.bf16.mxu0 0
    %839 = vmatpush2.bf16.msra.mxu0 0
    %840 = vmatprep.subr.bf16.mxu0 0
    %841 = vmatpush2.bf16.msra.mxu0 0
    %842 = vmatprep.subr.bf16.mxu0 0
    %843 = vmatpush2.bf16.msra.mxu0 0
    %844 = vmatprep.subr.bf16.mxu0 0
    %845 = vmatpush2.bf16.msra.mxu0 0
    %846 = vmatprep.mubr.bf16.mxu0 0
    %847 = vmatmul.mubr.bf16.gmra.mxu0 %v809
    %v848 = vpop.f32.mrf.mxu0
    %v849 = vadd.f32 0.0, %v848
    %v850 = vpop.f32.mrf.mxu0
    %v851 = vpop.f32.mrf.mxu0
    %v852 = vpop.f32.mrf.mxu0
    %853 = vdwg.mxu0
    %854 = vrot.lane.b32.xlu0 %v167, 64
    %v855 = vpop.permute.xlu0 %854
    %v857 = vsel %vm175, %v657, 0
    %v860 = vsel %vm666, %v855, 0
    %862 = vmatprep.subr.bf16.mxu0 0
    %863 = vmatpush1.bf16.msra.mxu0 0
    %864 = vmatprep.subr.bf16.mxu0 0
    %865 = vmatpush1.bf16.msra.mxu0 0
    %866 = vmatprep.subr.bf16.mxu0 0
    %867 = vmatpush1.bf16.msra.mxu0 0
    %868 = vmatprep.subr.bf16.mxu0 0
    %869 = vmatpush1.bf16.msra.mxu0 0
    %870 = vmatprep.subr.bf16.mxu0 0
    %871 = vmatpush1.bf16.msra.mxu0 0
    %872 = vmatprep.subr.bf16.mxu0 0
    %873 = vmatpush1.bf16.msra.mxu0 0
    %874 = vmatprep.subr.bf16.mxu0 0
    %875 = vmatpush1.bf16.msra.mxu0 0
    %876 = vmatprep.subr.bf16.mxu0 0
    %877 = vmatpush1.bf16.msra.mxu0 %v860
    %878 = vmatprep.subr.bf16.mxu0 0
    %879 = vmatpush2.bf16.msra.mxu0 0
    %880 = vmatprep.subr.bf16.mxu0 0
    %881 = vmatpush2.bf16.msra.mxu0 0
    %882 = vmatprep.subr.bf16.mxu0 0
    %883 = vmatpush2.bf16.msra.mxu0 0
    %884 = vmatprep.subr.bf16.mxu0 0
    %885 = vmatpush2.bf16.msra.mxu0 0
    %886 = vmatprep.subr.bf16.mxu0 0
    %887 = vmatpush2.bf16.msra.mxu0 0
    %888 = vmatprep.subr.bf16.mxu0 0
    %889 = vmatpush2.bf16.msra.mxu0 0
    %890 = vmatprep.subr.bf16.mxu0 0
    %891 = vmatpush2.bf16.msra.mxu0 0
    %892 = vmatprep.subr.bf16.mxu0 0
    %893 = vmatpush2.bf16.msra.mxu0 0
    %894 = vmatprep.mubr.bf16.mxu0 0
    %895 = vmatmul.mubr.bf16.gmra.mxu0 %v857
    %v896 = vpop.f32.mrf.mxu0
    %v897 = vadd.f32 0.0, %v896
    %v898 = vpop.f32.mrf.mxu0
    %v899 = vpop.f32.mrf.mxu0
    %v900 = vpop.f32.mrf.mxu0
    %901 = vdwg.mxu0
    %902 = vrot.lane.b32.xlu0 %v168, 64
    %v903 = vpop.permute.xlu0 %902
    %v905 = vsel %vm175, %v658, 0
    %v908 = vsel %vm666, %v903, 0
    %910 = vmatprep.subr.bf16.mxu0 0
    %911 = vmatpush1.bf16.msra.mxu0 0
    %912 = vmatprep.subr.bf16.mxu0 0
    %913 = vmatpush1.bf16.msra.mxu0 0
    %914 = vmatprep.subr.bf16.mxu0 0
    %915 = vmatpush1.bf16.msra.mxu0 0
    %916 = vmatprep.subr.bf16.mxu0 0
    %917 = vmatpush1.bf16.msra.mxu0 0
    %918 = vmatprep.subr.bf16.mxu0 0
    %919 = vmatpush1.bf16.msra.mxu0 0
    %920 = vmatprep.subr.bf16.mxu0 0
    %921 = vmatpush1.bf16.msra.mxu0 0
    %922 = vmatprep.subr.bf16.mxu0 0
    %923 = vmatpush1.bf16.msra.mxu0 0
    %924 = vmatprep.subr.bf16.mxu0 0
    %925 = vmatpush1.bf16.msra.mxu0 %v908
    %926 = vmatprep.subr.bf16.mxu0 0
    %927 = vmatpush2.bf16.msra.mxu0 0
    %928 = vmatprep.subr.bf16.mxu0 0
    %929 = vmatpush2.bf16.msra.mxu0 0
    %930 = vmatprep.subr.bf16.mxu0 0
    %931 = vmatpush2.bf16.msra.mxu0 0
    %932 = vmatprep.subr.bf16.mxu0 0
    %933 = vmatpush2.bf16.msra.mxu0 0
    %934 = vmatprep.subr.bf16.mxu0 0
    %935 = vmatpush2.bf16.msra.mxu0 0
    %936 = vmatprep.subr.bf16.mxu0 0
    %937 = vmatpush2.bf16.msra.mxu0 0
    %938 = vmatprep.subr.bf16.mxu0 0
    %939 = vmatpush2.bf16.msra.mxu0 0
    %940 = vmatprep.subr.bf16.mxu0 0
    %941 = vmatpush2.bf16.msra.mxu0 0
    %942 = vmatprep.mubr.bf16.mxu0 0
    %943 = vmatmul.mubr.bf16.gmra.mxu0 %v905
    %v944 = vpop.f32.mrf.mxu0
    %v945 = vadd.f32 0.0, %v944
    %v946 = vpop.f32.mrf.mxu0
    %v947 = vpop.f32.mrf.mxu0
    %v948 = vpop.f32.mrf.mxu0
    %949 = vdwg.mxu0
    %950 = vrot.lane.b32.xlu0 %v169, 64
    %v951 = vpop.permute.xlu0 %950
    %v953 = vsel %vm175, %v659, 0
    %v956 = vsel %vm666, %v951, 0
    %958 = vmatprep.subr.bf16.mxu0 0
    %959 = vmatpush1.bf16.msra.mxu0 0
    %960 = vmatprep.subr.bf16.mxu0 0
    %961 = vmatpush1.bf16.msra.mxu0 0
    %962 = vmatprep.subr.bf16.mxu0 0
    %963 = vmatpush1.bf16.msra.mxu0 0
    %964 = vmatprep.subr.bf16.mxu0 0
    %965 = vmatpush1.bf16.msra.mxu0 0
    %966 = vmatprep.subr.bf16.mxu0 0
    %967 = vmatpush1.bf16.msra.mxu0 0
    %968 = vmatprep.subr.bf16.mxu0 0
    %969 = vmatpush1.bf16.msra.mxu0 0
    %970 = vmatprep.subr.bf16.mxu0 0
    %971 = vmatpush1.bf16.msra.mxu0 0
    %972 = vmatprep.subr.bf16.mxu0 0
    %973 = vmatpush1.bf16.msra.mxu0 %v956
    %974 = vmatprep.subr.bf16.mxu0 0
    %975 = vmatpush2.bf16.msra.mxu0 0
    %976 = vmatprep.subr.bf16.mxu0 0
    %977 = vmatpush2.bf16.msra.mxu0 0
    %978 = vmatprep.subr.bf16.mxu0 0
    %979 = vmatpush2.bf16.msra.mxu0 0
    %980 = vmatprep.subr.bf16.mxu0 0
    %981 = vmatpush2.bf16.msra.mxu0 0
    %982 = vmatprep.subr.bf16.mxu0 0
    %983 = vmatpush2.bf16.msra.mxu0 0
    %984 = vmatprep.subr.bf16.mxu0 0
    %985 = vmatpush2.bf16.msra.mxu0 0
    %986 = vmatprep.subr.bf16.mxu0 0
    %987 = vmatpush2.bf16.msra.mxu0 0
    %988 = vmatprep.subr.bf16.mxu0 0
    %989 = vmatpush2.bf16.msra.mxu0 0
    %990 = vmatprep.mubr.bf16.mxu0 0
    %991 = vmatmul.mubr.bf16.gmra.mxu0 %v953
    %v992 = vpop.f32.mrf.mxu0
    %v993 = vadd.f32 0.0, %v992
    %v994 = vpop.f32.mrf.mxu0
    %v995 = vpop.f32.mrf.mxu0
    %v996 = vpop.f32.mrf.mxu0
    %997 = vdwg.mxu0
    %998 = vrot.lane.b32.xlu0 %v170, 64
    %v999 = vpop.permute.xlu0 %998
    %v1001 = vsel %vm175, %v660, 0
    %v1004 = vsel %vm666, %v999, 0
    %1006 = vmatprep.subr.bf16.mxu0 0
    %1007 = vmatpush1.bf16.msra.mxu0 0
    %1008 = vmatprep.subr.bf16.mxu0 0
    %1009 = vmatpush1.bf16.msra.mxu0 0
    %1010 = vmatprep.subr.bf16.mxu0 0
    %1011 = vmatpush1.bf16.msra.mxu0 0
    %1012 = vmatprep.subr.bf16.mxu0 0
    %1013 = vmatpush1.bf16.msra.mxu0 0
    %1014 = vmatprep.subr.bf16.mxu0 0
    %1015 = vmatpush1.bf16.msra.mxu0 0
    %1016 = vmatprep.subr.bf16.mxu0 0
    %1017 = vmatpush1.bf16.msra.mxu0 0
    %1018 = vmatprep.subr.bf16.mxu0 0
    %1019 = vmatpush1.bf16.msra.mxu0 0
    %1020 = vmatprep.subr.bf16.mxu0 0
    %1021 = vmatpush1.bf16.msra.mxu0 %v1004
    %1022 = vmatprep.subr.bf16.mxu0 0
    %1023 = vmatpush2.bf16.msra.mxu0 0
    %1024 = vmatprep.subr.bf16.mxu0 0
    %1025 = vmatpush2.bf16.msra.mxu0 0
    %1026 = vmatprep.subr.bf16.mxu0 0
    %1027 = vmatpush2.bf16.msra.mxu0 0
    %1028 = vmatprep.subr.bf16.mxu0 0
    %1029 = vmatpush2.bf16.msra.mxu0 0
    %1030 = vmatprep.subr.bf16.mxu0 0
    %1031 = vmatpush2.bf16.msra.mxu0 0
    %1032 = vmatprep.subr.bf16.mxu0 0
    %1033 = vmatpush2.bf16.msra.mxu0 0
    %1034 = vmatprep.subr.bf16.mxu0 0
    %1035 = vmatpush2.bf16.msra.mxu0 0
    %1036 = vmatprep.subr.bf16.mxu0 0
    %1037 = vmatpush2.bf16.msra.mxu0 0
    %1038 = vmatprep.mubr.bf16.mxu0 0
    %1039 = vmatmul.mubr.bf16.gmra.mxu0 %v1001
    %v1040 = vpop.f32.mrf.mxu0
    %v1041 = vadd.f32 0.0, %v1040
    %v1042 = vpop.f32.mrf.mxu0
    %v1043 = vpop.f32.mrf.mxu0
    %v1044 = vpop.f32.mrf.mxu0
    %1045 = vdwg.mxu0
    %1047 = vrot.lane.b32.xlu0 %v753, 8
    %v1048 = vpop.permute.xlu0 %1047
    %1051 = vrot.lane.b32.xlu0 %v801, 16
    %v1052 = vpop.permute.xlu0 %1051
    %1055 = vrot.lane.b32.xlu0 %v849, 24
    %v1056 = vpop.permute.xlu0 %1055
    %v1058 = vsel %vm175, %v705, %v1048
    %vm1059 = vcmask 130048
    %v1060 = vsel %vm1059, %v1058, %v1052
    %vm1061 = vcmask 195584
    %v1062 = vsel %vm1061, %v1060, %v1056
    %1064 = vrot.lane.b32.xlu0 %v945, 8
    %v1065 = vpop.permute.xlu0 %1064
    %1068 = vrot.lane.b32.xlu0 %v993, 16
    %v1069 = vpop.permute.xlu0 %1068
    %1072 = vrot.lane.b32.xlu0 %v1041, 24
    %v1073 = vpop.permute.xlu0 %1072
    %v1075 = vsel %vm175, %v897, %v1065
    %v1076 = vsel %vm1059, %v1075, %v1069
    %v1077 = vsel %vm1061, %v1076, %v1073
    %v1078 = vpack.c.bf16 %v1077, %v1062
    %v1079 = vld [vmem:[#allocation7] sm:$0xf]
    %v1080 = vld [vmem:[#allocation7 + $0x4] sm:$0xf]
    %v1081 = vld [vmem:[#allocation7 + $0x8] sm:$0xf]
    %v1082 = vld [vmem:[#allocation7 + $0xc] sm:$0xf]
    %v1083 = vld [vmem:[%s4] sm:$0x1]
    %v1085 = vlaneseq
    %v1086 = vshrl.u32 %v1085, 7
    %v1087 = vsub.s32 0, %v1086
    %v1088 = vrot.slane %v1083, %v1087
    %v1094 = vunpack.c.l.b16 %v1079
    %v1095 = vunpack.c.l.b16 %v1080
    %v1096 = vunpack.c.l.b16 %v1081
    %v1097 = vunpack.c.l.b16 %v1082
    %v1098 = vpack.c.b16 %v1095, %v1094
    %v1099 = vpack.c.b16 %v1097, %v1096
    %v1103 = vsel %vm98, %v1078, 0
    %1105 = vmatprep.subr.bf16.mxu0 0
    %1106 = vmatpush1.bf16.msra.mxu0 0
    %1107 = vmatprep.subr.bf16.mxu0 0
    %1108 = vmatpush1.bf16.msra.mxu0 0
    %1109 = vmatprep.subr.bf16.mxu0 0
    %1110 = vmatpush1.bf16.msra.mxu0 0
    %1111 = vmatprep.subr.bf16.mxu0 0
    %1112 = vmatpush1.bf16.msra.mxu0 0
    %1113 = vmatprep.subr.bf16.mxu0 0
    %1114 = vmatpush1.bf16.msra.mxu0 0
    %1115 = vmatprep.subr.bf16.mxu0 0
    %1116 = vmatpush1.bf16.msra.mxu0 0
    %1117 = vmatprep.subr.bf16.mxu0 0
    %1118 = vmatpush1.bf16.msra.mxu0 %v1099
    %1119 = vmatprep.subr.bf16.mxu0 0
    %1120 = vmatpush1.bf16.msra.mxu0 %v1098
    %1121 = vmatprep.subr.bf16.mxu0 0
    %1122 = vmatpush2.bf16.msra.mxu0 0
    %1123 = vmatprep.subr.bf16.mxu0 0
    %1124 = vmatpush2.bf16.msra.mxu0 0
    %1125 = vmatprep.subr.bf16.mxu0 0
    %1126 = vmatpush2.bf16.msra.mxu0 0
    %1127 = vmatprep.subr.bf16.mxu0 0
    %1128 = vmatpush2.bf16.msra.mxu0 0
    %1129 = vmatprep.subr.bf16.mxu0 0
    %1130 = vmatpush2.bf16.msra.mxu0 0
    %1131 = vmatprep.subr.bf16.mxu0 0
    %1132 = vmatpush2.bf16.msra.mxu0 0
    %1133 = vmatprep.subr.bf16.mxu0 0
    %1134 = vmatpush2.bf16.msra.mxu0 0
    %1135 = vmatprep.subr.bf16.mxu0 0
    %1136 = vmatpush2.bf16.msra.mxu0 0
    %1137 = vmatprep.mubr.bf16.mxu0 0
    %1138 = vmatmul.mubr.bf16.gmra.mxu0 %v1103
    %v1139 = vpop.f32.mrf.mxu0
    %v1140 = vadd.f32 %v1088, %v1139
    %v1141 = vpop.f32.mrf.mxu0
    %v1142 = vpop.f32.mrf.mxu0
    %v1143 = vadd.f32 %v1088, %v1142
    %v1144 = vpop.f32.mrf.mxu0
    %1145 = vdwg.mxu0
    %1146 = vst.msk [vmem:[#allocation10] sm:$0xff] %vm98, %v1140
    %1147 = vst.msk [vmem:[#allocation10 + $0x8] sm:$0xff] %vm98, %v1143
    // Predicated region
    $region38: #{tpu_custom_call.1} parent=1 // pred_check
      _
    $region39: #{tpu_custom_call.1} parent=1 // pred_check_branch
      %1149 = sbr.rel (0) target = $region41
    $region40: #{tpu_custom_call.1} parent=1 // pred_region
      %s1151 = ssub.s32 256, 256
      %1152 = vsyncadd [#allocation4], %s1151
      %s1153 = sshll.u32 [#allocation10], 4
      %s1154 = int_to_ptr.vmem [resolvable:$true] %s1153
      %1159 = dma.vmem_to_hbm [thread:$0]  %s1154, 256, %s5, [#allocation4], 128, 128, 8
    $region41: #{tpu_custom_call.1} parent=1 // pred_fallthru
      _
    // Predicated region
    $region42: #{tpu_custom_call.1} parent=1 // pred_check
      _
    $region43: #{tpu_custom_call.1} parent=1 // pred_check_branch
      %1161 = sbr.rel (0) target = $region45
    $region44: #{tpu_custom_call.1} parent=1 // pred_region
      %1162 = dma.done [#allocation4], 256
    $region45: #{tpu_custom_call.1} parent=1 // pred_fallthru
      _
    %1163 = vsyncpa [#allocation3], 1
    %1164 = vsyncpa [#allocation6], 1
    %1165 = vsyncpa [#allocation9], 1
    %1166 = vsyncpa [#allocation4], 1

</llo_original>
